<compile_context>
chip_gen: v6e
topology: v6e:2x2x1
jax: 0.10.0
libtpu: 0.0.40
codegen_flags: <defaults>
</compile_context>

<pallas_src>
import jax
import jax.numpy as jnp
from jax.experimental import pallas as pl
from jax.experimental.pallas import tpu as pltpu

CURVATURE_C = 1.0        # deterministic manifold parameter
MIN_NORM = 1e-15         # clamp_min on ||p||, matching the torch code
BALL_EPS = 1e-7          # f32-representable clamp: artanh arg <= 1 - BALL_EPS


def logmap0_kernel(x_ref, o_ref):
    # Row-wise L2 norm reduction + elementwise rescale, all in VMEM.
    x = x_ref[...]
    xf = x.astype(jnp.float32)                           # norms in f32

    sqrt_c = jnp.float32(CURVATURE_C ** 0.5)
    inv_sqrt_c = jnp.float32(1.0 / (CURVATURE_C ** 0.5))

    sq = jnp.sum(xf * xf, axis=-1, keepdims=True)        # (tile_rows, 1)
    p_norm = jnp.maximum(jnp.sqrt(sq), jnp.float32(MIN_NORM))

    # sqrt_c * p_norm > 0 always, so only the upper clamp is needed.
    arg = jnp.minimum(sqrt_c * p_norm, jnp.float32(1.0 - BALL_EPS))

    # artanh(a) = 0.5*(log1p(a) - log1p(-a)); log1p keeps tiny-||x|| rows
    # accurate (the old log((1+a)/(1-a)) form underflowed to 0 near origin).
    artanh = 0.5 * (jnp.log1p(arg) - jnp.log1p(-arg))

    # EUP handles log / reciprocal; VPU slack is huge (kernel is HBM-bound).
    scale = inv_sqrt_c * artanh * pl.reciprocal(p_norm, approx=False)

    # Rescale in f32 and cast exactly once at the store.
    o_ref[...] = (scale * xf).astype(o_ref.dtype)


def _cdiv(a, b):
    return -(-a // b)


def _round_up(a, m):
    return _cdiv(a, m) * m


def _vmem_budget_bytes():
    """~3/8 of physical VMEM for the tile working set; generation-aware."""
    cap = 64 * 1024 * 1024                      # conservative fallback (v7x)
    try:
        info = pltpu.get_tpu_info()
        cap = int(getattr(info, "vmem_capacity_bytes", cap))
    except Exception:
        pass
    # v5e/v6e (128 MiB) -> 48 MiB budget; v7x (64 MiB) -> 24 MiB budget.
    return max(16 * 1024 * 1024, (cap * 3) // 8)


def _choose_tile_rows(n, d_blk, itemsize, budget):
    """Largest row tile that (a) fits the VMEM budget and (b) keeps >=8 steps."""
    itemsize = max(int(itemsize), 1)
    # Native sublane granule per dtype: 8 rows (f32), 16 (bf16/f16), 32 (int8).
    granule = max(8, 32 // itemsize)
    # Per-row footprint: double-buffered in + out tiles in the input dtype
    # (2 bufs each = 4x) plus the in-kernel f32 temp (4 B/elem).
    bytes_per_row = d_blk * (4 * itemsize + 4)
    max_rows = max(granule, (budget // bytes_per_row) // granule * granule)
    # >= 8 grid steps when N allows it: >=4 per core on v7x so in/out DMAs
    # hide behind compute on both TensorCores; deep pipeline on v5e/v6e too.
    target = _round_up(max(1, _cdiv(n, 8)), granule)
    n_gran = _round_up(max(1, n), granule)      # never exceed the array
    return max(granule, min(max_rows, target, n_gran))


def log_zero(x):
    """PoincareBall logmap0 (curvature c=1.0) over the last dim of x."""
    orig_shape = x.shape
    d = orig_shape[-1]
    x2 = x.reshape(-1, d)                       # collapse leading dims (cheap)
    n = x2.shape[0]
    itemsize = jnp.dtype(x.dtype).itemsize

    # Column pad only when the feature dim is not lane-aligned; zeros are
    # exact (don't change the row norm) and are sliced away below.  Rows are
    # NEVER padded: the tail grid step is partially out-of-bounds, which is
    # safe because rows are independent and OOB stores are dropped.
    if d % 128 == 0:
        d_blk = d
        xp = x2
    else:
        d_blk = _round_up(d, 128)
        xp = jnp.zeros((n, d_blk), dtype=x.dtype).at[:, :d].set(x2)

    budget = _vmem_budget_bytes()
    tile_rows = _choose_tile_rows(n, d_blk, itemsize, budget)
    grid = (_cdiv(n, tile_rows),)
    vmem_limit = budget + (8 << 20)             # footprint + compiler headroom

    out = pl.pallas_call(
        logmap0_kernel,
        out_shape=jax.ShapeDtypeStruct((n, d_blk), x.dtype),
        grid_spec=pltpu.PrefetchScalarGridSpec(
            num_scalar_prefetch=0,
            grid=grid,
            in_specs=[pl.BlockSpec((tile_rows, d_blk), lambda i: (i, 0))],
            out_specs=pl.BlockSpec((tile_rows, d_blk), lambda i: (i, 0)),
        ),
        compiler_params=pltpu.CompilerParams(
            dimension_semantics=("parallel",),
            vmem_limit_bytes=int(vmem_limit),
        ),
        cost_estimate=pl.CostEstimate(
            flops=3 * n * d_blk,
            transcendentals=3 * n,
            bytes_accessed=2 * n * d_blk * itemsize,
        ),
    )(xp)

    if d_blk != d:
        out = out[:, :d]
    return out.reshape(orig_shape)


def logmap0_reference(x):
    # Pure-JAX reference of the same math (for sanity check).
    x32 = x.astype(jnp.float32)
    sqrt_c = jnp.float32(CURVATURE_C) ** 0.5
    p_norm = jnp.maximum(jnp.linalg.norm(x32, axis=-1, keepdims=True),
                         jnp.float32(MIN_NORM))
    arg = jnp.minimum(sqrt_c * p_norm, jnp.float32(1.0 - BALL_EPS))
    scale = (1.0 / sqrt_c) * jnp.arctanh(arg) / p_norm
    return (scale * x32).astype(x.dtype)


if __name__ == "__main__":
    key = jax.random.PRNGKey(0)
    N, D = 16, 32  # small: 16 points in a 32-dim Poincare ball
    # Points must lie inside the unit ball (||x|| < 1) for c=1.
    x = 0.3 * jax.random.normal(key, (N, D), dtype=jnp.float32)
    x = x / (1.0 + jnp.linalg.norm(x, axis=-1, keepdims=True))

    out = jax.block_until_ready(log_zero(x))

    ref = logmap0_reference(x)
    assert out.shape == (N, D) and out.dtype == x.dtype
    assert jnp.allclose(out, ref, atol=1e-5, rtol=1e-5)

    print("KERNEL_OK")
</pallas_src>

<mosaic_0001>
module attributes {stable_mosaic.version = 11 : i64} {
  func.func @logmap0_kernel(%arg0: i32, %arg1: memref<8x128xf32, #tpu.memory_space<vmem>>, %arg2: memref<8x128xf32, #tpu.memory_space<vmem>>) attributes {dimension_semantics = [#tpu.dimension_semantics<parallel>], iteration_bounds = array<i64: 2>, scalar_prefetch = 0 : i64, scratch_operands = 0 : i64, tpu.core_type = #tpu.core_type<tc>, window_params = [{transform_indices = @transform_0, window_bounds = array<i64: 8, 128>}, {transform_indices = @transform_1, window_bounds = array<i64: 8, 128>}]} {
    %c0 = arith.constant 0 : index
    %c0_0 = arith.constant 0 : index
    %0 = vector.load %arg1[%c0, %c0_0] : memref<8x128xf32, #tpu.memory_space<vmem>>, vector<8x128xf32>
    %1 = arith.mulf %0, %0 : vector<8x128xf32>
    %cst = arith.constant dense<0.000000e+00> : vector<8xf32>
    %2 = vector.multi_reduction <add>, %1, %cst [1] : vector<8x128xf32> to vector<8xf32>
    %3 = vector.shape_cast %2 : vector<8xf32> to vector<8x1xf32>
    %4 = math.sqrt %3 : vector<8x1xf32>
    %cst_1 = arith.constant 1.000000e-15 : f32
    %5 = vector.broadcast %cst_1 : f32 to vector<8x1xf32>
    %6 = arith.maximumf %4, %5 : vector<8x1xf32>
    %cst_2 = arith.constant 1.000000e+00 : f32
    %7 = vector.broadcast %cst_2 : f32 to vector<8x1xf32>
    %8 = arith.mulf %7, %6 : vector<8x1xf32>
    %cst_3 = arith.constant 0.99999988 : f32
    %9 = vector.broadcast %cst_3 : f32 to vector<8x1xf32>
    %10 = arith.minimumf %8, %9 : vector<8x1xf32>
    %11 = math.log1p %10 : vector<8x1xf32>
    %cst_4 = arith.constant 0.000000e+00 : f32
    %12 = vector.broadcast %cst_4 : f32 to vector<8x1xf32>
    %13 = arith.subf %12, %10 : vector<8x1xf32>
    %14 = math.log1p %13 : vector<8x1xf32>
    %15 = arith.subf %11, %14 : vector<8x1xf32>
    %cst_5 = arith.constant 5.000000e-01 : f32
    %16 = vector.broadcast %cst_5 : f32 to vector<8x1xf32>
    %17 = arith.mulf %16, %15 : vector<8x1xf32>
    %cst_6 = arith.constant 1.000000e+00 : f32
    %18 = vector.broadcast %cst_6 : f32 to vector<8x1xf32>
    %19 = arith.mulf %18, %17 : vector<8x1xf32>
    %20 = tpu.reciprocal %6 : vector<8x1xf32> -> vector<8x1xf32>
    %21 = arith.mulf %19, %20 : vector<8x1xf32>
    %22 = vector.broadcast %21 : vector<8x1xf32> to vector<8x128xf32>
    %23 = arith.mulf %22, %0 : vector<8x128xf32>
    %c0_7 = arith.constant 0 : index
    %c0_8 = arith.constant 0 : index
    %24 = vector.load %arg2[%c0_7, %c0_8] : memref<8x128xf32, #tpu.memory_space<vmem>>, vector<8x128xf32>
    tpu.vector_store %arg2[%c0_7, %c0_8], %23 {strides = array<i32>} : memref<8x128xf32, #tpu.memory_space<vmem>>, vector<8x128xf32>,
    return
  }
  func.func @transform_0(%arg0: i32) -> (i32, i32) {
    %c0_i32 = arith.constant 0 : i32
    %c0_i32_0 = arith.constant 0 : i32
    return %arg0, %c0_i32 : i32, i32
  }
  func.func @transform_1(%arg0: i32) -> (i32, i32) {
    %c0_i32 = arith.constant 0 : i32
    %c0_i32_0 = arith.constant 0 : i32
    return %arg0, %c0_i32 : i32, i32
  }
}

</mosaic_0001>

<llo_original>
// kernel: tpu_custom_call.1
$region0: #{tpu_custom_call.1}
  #allocation0 [shape = 'u32[]', space=smem, size = 0x4, offset = 0x4, fixed_abs, tag = 'smem constant byte address 0x4 - core index']
  #allocation1 [shape = 'u32[144,128]{1,0:T(1,128)}', space=vmem, size = 0x12000, scoped, tag = 'internal scratch']
  %s0 = inlined_call_operand.hbm [shape: f32[16,128], index: 0, kind: input, shape index: {}]
  %s1 = inlined_call_operand.hbm [shape: f32[16,128], index: 1, kind: output, shape index: {}]
  %s2 = sld [smem:[#allocation0]]
  $region41: #{tpu_custom_call.1} parent=0
    _
  %s4 = ssub.s32 1, %s2
  %s5 = scalar_select 0, %s4, %s2
  $region1: #{tpu_custom_call.1} parent=0
    #allocation2 [shape = 'u8[8192]{0}', space=vmem, size = 0x2000, scoped, tag = 'input window, operand 0']
    #allocation3 [shape = 's32[2]{0}', space=sflag, size = 0x8, scoped, tag = 'scoped memory for tpu_custom_call.1']
    #allocation4 [shape = 's32[2]{0}', space=sflag, size = 0x8, scoped, tag = 'scoped memory for tpu_custom_call.1']
    #allocation5 [shape = 'u8[8192]{0}', space=vmem, size = 0x2000, scoped, tag = 'output window, operand 0']
    %6 = vsyncpa [#allocation3], 0
    %s7 = scalar_lea.sflag [#allocation3], 1
    %8 = vsyncpa %s7, 0
    %9 = vsyncpa [#allocation4], 0
    %s10 = scalar_lea.sflag [#allocation4], 1
    %11 = vsyncpa %s10, 0
    loop: start=0, step=1, limit=4
    $region2: #{tpu_custom_call.1} parent=1 // loop_pre_header
      _
    $region3: #{tpu_custom_call.1} parent=1 // loop_header
      %s13 = sphi 0, %s17
      %p14 = scmp.ge.s32.totalorder %s13, 4
      %s23 = sphi 0, %s25
      %s26 = sphi 0, %s23
      %s27 = sphi 0, %s26
      %s43 = sphi 0, %s27
      %s49 = sphi 0, %s51
      %s52 = sphi 0, %s49
      %s53 = sphi 0, %s52
      %s69 = sphi 0, %s53
    $region4: #{tpu_custom_call.1} parent=1 // loop_header_branch
      %16 = sbr.rel (%p14) target = $region8
    $region5: #{tpu_custom_call.1} parent=1 // loop_body
      %s18 = ssub.s32 %s13, 1
      %s19 = ssub.s32 %s13, 2
      %s20 = sadd.s32 %s13, 1
      %s21 = ssub.s32 %s13, %s20
      %p22 = scmp.eq.s32.totalorder %s21, 0
      %s24 = sadd.s32 %s23, 1
      %s25 = scalar_select %p22, %s23, %s24
      %p28 = pneg %p22
      %p29 = scmp.eq.s32.totalorder %s13, 1
      %p30 = por %p28, %p29
      %p31 = scmp.ne.s32.totalorder %s23, %s26
      %p32 = scmp.eq.s32.totalorder %s13, 0
      %p33 = por %p31, %p32
      %p34 = scmp.ne.s32.totalorder %s23, %s26
      %p35 = scmp.eq.s32.totalorder %s18, 1
      %p36 = por %p34, %p35
      %p37 = scmp.ne.s32.totalorder %s26, %s27
      %p38 = scmp.eq.s32.totalorder %s18, 0
      %p39 = por %p37, %p38
      %p40 = scmp.ne.s32.totalorder %s26, %s27
      %p41 = scmp.eq.s32.totalorder %s19, 1
      %p42 = por %p40, %p41
      %p44 = scmp.ne.s32.totalorder %s27, %s43
      %p45 = scmp.eq.s32.totalorder %s19, 0
      %p46 = por %p44, %p45
      %s47 = ssub.s32 %s13, %s20
      %p48 = scmp.eq.s32.totalorder %s47, 0
      %s50 = sadd.s32 %s49, 1
      %s51 = scalar_select %p48, %s49, %s50
      %p54 = pneg %p48
      %p55 = scmp.eq.s32.totalorder %s13, 1
      %p56 = por %p54, %p55
      %p57 = scmp.ne.s32.totalorder %s49, %s52
      %p58 = scmp.eq.s32.totalorder %s13, 0
      %p59 = por %p57, %p58
      %p60 = scmp.ne.s32.totalorder %s49, %s52
      %p61 = scmp.eq.s32.totalorder %s18, 1
      %p62 = por %p60, %p61
      %p63 = scmp.ne.s32.totalorder %s52, %s53
      %p64 = scmp.eq.s32.totalorder %s18, 0
      %p65 = por %p63, %p64
      %p66 = scmp.ne.s32.totalorder %s52, %s53
      %p67 = scmp.eq.s32.totalorder %s19, 1
      %p68 = por %p66, %p67
      %p70 = scmp.ne.s32.totalorder %s53, %s69
      %p71 = scmp.eq.s32.totalorder %s19, 0
      %p72 = por %p70, %p71
      %p73 = scmp.le.s32.totalorder 1, %s13
      %p74 = scmp.lt.s32.totalorder %s13, 3
      %p75 = pnand %p73, %p74
      %p76 = pneg %p75
      // Predicated region
      $region9: #{tpu_custom_call.1} parent=5 // pred_check
        _
      $region10: #{tpu_custom_call.1} parent=5 // pred_check_branch
        %78 = sbr.rel (%p75) target = $region12
      $region11: #{tpu_custom_call.1} parent=5 // pred_region
        %s79 = ssub.s32 %s13, 1
      $region12: #{tpu_custom_call.1} parent=5 // pred_fallthru
        _
      %p80 = scmp.lt.s32.totalorder %s13, 2
      // Predicated region
      $region13: #{tpu_custom_call.1} parent=5 // pred_check
        %p81 = pneg %p80
      $region14: #{tpu_custom_call.1} parent=5 // pred_check_branch
        %83 = sbr.rel (%p81) target = $region16
      $region15: #{tpu_custom_call.1} parent=5 // pred_region
        // Predicated region
        $region17: #{tpu_custom_call.1} parent=15 // pred_check
          %p84 = pneg %p33
        $region18: #{tpu_custom_call.1} parent=15 // pred_check_branch
          %86 = sbr.rel (%p84) target = $region20
        $region19: #{tpu_custom_call.1} parent=15 // pred_region
          %s87 = sand.u32 %s23, 1
          %s88 = scalar_lea.sflag [#allocation3], %s87
          %s89 = sand.u32 %s23, 1
          %s90 = smul.addr %s89, 8
          %s91 = scalar_lea.vmem [#allocation2], %s90
          %s93 = ssub.s32 128, 128
          %94 = vsyncadd %s88, %s93
          %s95 = smul.addr %s13, 128
          %s96 = scalar_lea.hbm %s0, %s95
          %s98 = sshll.u32 %s91, 4
          %s99 = int_to_ptr.vmem [resolvable:$true] %s98
          %101 = dma.hbm_to_vmem [thread:$0]  %s96, 128, %s99, %s88
        $region20: #{tpu_custom_call.1} parent=15 // pred_fallthru
          _
      $region16: #{tpu_custom_call.1} parent=5 // pred_fallthru
        _
      %p102 = scmp.le.s32.totalorder 1, %s13
      %p103 = scmp.lt.s32.totalorder %s13, 3
      %p104 = pnand %p102, %p103
      %p105 = pneg %p104
      // Predicated region
      $region21: #{tpu_custom_call.1} parent=5 // pred_check
        _
      $region22: #{tpu_custom_call.1} parent=5 // pred_check_branch
        %107 = sbr.rel (%p104) target = $region24
      $region23: #{tpu_custom_call.1} parent=5 // pred_region
        %s108 = ssub.s32 %s13, 1
        %s109 = sand.u32 %s26, 1
        %s110 = scalar_lea.sflag [#allocation3], %s109
        %s111 = sand.u32 %s26, 1
        %s112 = smul.addr %s111, 8
        %s113 = scalar_lea.vmem [#allocation2], %s112
        // Predicated region
        $region25: #{tpu_custom_call.1} parent=23 // pred_check
          %p114 = pneg %p39
        $region26: #{tpu_custom_call.1} parent=23 // pred_check_branch
          %116 = sbr.rel (%p114) target = $region28
        $region27: #{tpu_custom_call.1} parent=23 // pred_region
          %117 = dma.done %s110, 128
        $region28: #{tpu_custom_call.1} parent=23 // pred_fallthru
          _
        %s118 = sand.u32 %s26, 1
        %s119 = scalar_lea.sflag [#allocation3], %s118
        %s120 = sand.u32 %s26, 1
        %s121 = smul.addr %s120, 8
        %s122 = scalar_lea.vmem [#allocation2], %s121
        %p123 = pneg %p39
        %p124 = pneg %p36
        %p125 = pneg %p65
        %p126 = pneg %p62
        %s127 = sand.u32 %s52, 1
        %s128 = scalar_lea.sflag [#allocation4], %s127
        %s129 = sand.u32 %s52, 1
        %s130 = smul.addr %s129, 8
        %s131 = scalar_lea.vmem [#allocation5], %s130
        %v132 = vld [vmem:[%s113] sm:$0xff]
        %v133 = vmul.f32 %v132, %v132
        %134 = vadd.xlane.f32.xlu0 %v133
        %v135 = vpop.xlane.xlu0 %134
        %v136 = vrsqrt.pop %v135
        %v137 = vmul.f32 %v135, %v136
        %vm138 = vcmp.eq.f32.partialorder %v135, inf
        %v139 = vsel %vm138, %v135, %v137
        %vm140 = vcmp.eq.f32.partialorder %v135, 0.0
        %v141 = vand.u32 %v135, 2147483648
        %v142 = vsel %vm140, %v141, %v139
        %v143 = vmax.f32 %v142, 1e-15
        %v144 = vmin.f32 %v143, 0.9999999
        %v145 = vadd.f32 %v144, 1.0
        %v146 = vlog2.pop %v145
        %v147 = vmul.f32 %v146, 0.6931472
        %v148 = vmul.f32 -0.5, %v144
        %v149 = vadd.f32 %v148, 1.0
        %v150 = vmul.f32 %v149, %v144
        %v151 = vand.u32 2147483647, %v144
        %vm152 = vcmp.lt.f32.partialorder %v151, 0.0004427343
        %v153 = vsel %vm152, %v150, %v147
        %v154 = vsub.f32 0.0, %v144
        %v155 = vadd.f32 %v154, 1.0
        %v156 = vlog2.pop %v155
        %v157 = vmul.f32 %v156, 0.6931472
        %v158 = vmul.f32 -0.5, %v154
        %v159 = vadd.f32 %v158, 1.0
        %v160 = vmul.f32 %v159, %v154
        %v161 = vand.u32 2147483647, %v154
        %vm162 = vcmp.lt.f32.partialorder %v161, 0.0004427343
        %v163 = vsel %vm162, %v160, %v157
        %v164 = vsub.f32 %v153, %v163
        %v165 = vmul.f32 %v164, 0.5
        %v166 = vrcp.pop %v143
        %v167 = vmul.f32 %v165, %v166
        %v168 = vmul.f32 %v167, %v132
        %169 = vst [vmem:[%s131] sm:$0xff] %v168
        %s170 = sand.u32 %s52, 1
        %s171 = scalar_lea.sflag [#allocation4], %s170
        %s172 = sand.u32 %s52, 1
        %s173 = smul.addr %s172, 8
        %s174 = scalar_lea.vmem [#allocation5], %s173
        // Predicated region
        $region29: #{tpu_custom_call.1} parent=23 // pred_check
          %p175 = pneg %p62
        $region30: #{tpu_custom_call.1} parent=23 // pred_check_branch
          %177 = sbr.rel (%p175) target = $region32
        $region31: #{tpu_custom_call.1} parent=23 // pred_region
          %s179 = ssub.s32 128, 128
          %180 = vsyncadd %s171, %s179
          %s181 = smul.addr %s18, 128
          %s182 = scalar_lea.hbm %s1, %s181
          %s184 = sshll.u32 %s174, 4
          %s185 = int_to_ptr.vmem [resolvable:$true] %s184
          %187 = dma.vmem_to_hbm [thread:$0]  %s185, 128, %s182, %s171
        $region32: #{tpu_custom_call.1} parent=23 // pred_fallthru
          _
      $region24: #{tpu_custom_call.1} parent=5 // pred_fallthru
        _
      %p188 = scmp.le.s32.totalorder 2, %s13
      // Predicated region
      $region33: #{tpu_custom_call.1} parent=5 // pred_check
        %p189 = pneg %p188
      $region34: #{tpu_custom_call.1} parent=5 // pred_check_branch
        %191 = sbr.rel (%p189) target = $region36
      $region35: #{tpu_custom_call.1} parent=5 // pred_region
        %s192 = ssub.s32 %s13, 2
        // Predicated region
        $region37: #{tpu_custom_call.1} parent=35 // pred_check
          %p193 = pneg %p68
        $region38: #{tpu_custom_call.1} parent=35 // pred_check_branch
          %195 = sbr.rel (%p193) target = $region40
        $region39: #{tpu_custom_call.1} parent=35 // pred_region
          %s196 = sand.u32 %s53, 1
          %s197 = scalar_lea.sflag [#allocation4], %s196
          %s198 = sand.u32 %s53, 1
          %s199 = smul.addr %s198, 8
          %s200 = scalar_lea.vmem [#allocation5], %s199
          %201 = dma.done %s197, 128
        $region40: #{tpu_custom_call.1} parent=35 // pred_fallthru
          _
      $region36: #{tpu_custom_call.1} parent=5 // pred_fallthru
        _
    $region6: #{tpu_custom_call.1} parent=1 // loop_footer
      %s17 = sadd.s32 1, %s13
    $region7: #{tpu_custom_call.1} parent=1 // loop_footer_branch
      %12 = sbr.rel target = $region3
    $region8: #{tpu_custom_call.1} parent=1 // loop_exit
      _
    %202 = vsyncpa [#allocation3], 1
    %s203 = scalar_lea.sflag [#allocation3], 1
    %204 = vsyncpa %s203, 1
    %205 = vsyncpa [#allocation4], 1
    %s206 = scalar_lea.sflag [#allocation4], 1
    %207 = vsyncpa %s206, 1

</llo_original>
